<compile_context>
chip_gen: v7x
topology: tpu7x:2x2x1
jax: 0.10.0
libtpu: 0.0.40
codegen_flags: <defaults>
</compile_context>

<pallas_src>
import functools

import jax
import jax.numpy as jnp
from jax.experimental import pallas as pl
from jax.experimental.pallas import tpu as pltpu

EPS = 1e-8


# ----------------------------- Pallas kernel ------------------------------- #

def _adain_kernel(x_ref, gb_ref, out_ref, *, hw):
    # x tile arrives in its native dtype; do all statistics in f32.
    x = x_ref[...].astype(jnp.float32)                   # (TM, HW)
    mu = jnp.mean(x, axis=1, keepdims=True)              # (TM, 1)  XLU reduce
    d = x - mu
    # torch.std default: unbiased (Bessel-corrected) variance over H*W.
    # max(.,1) only guards the degenerate hw==1 trace-time division.
    var = jnp.sum(d * d, axis=1, keepdims=True) * (1.0 / max(hw - 1, 1))
    sigma = jnp.sqrt(var)                                 # (TM, 1)
    gamma = gb_ref[:, 0:1]                                # (TM, 1) f32
    beta = gb_ref[:, 1:2]                                 # (TM, 1) f32
    scale = gamma / (sigma + EPS)
    out_ref[...] = (d * scale + beta).astype(out_ref.dtype)


# ------------------------------- wrapper ------------------------------------ #

def _pick_tile_rows(rows, hw, itemsize):
    """Row-tile size: big enough to amortize per-step overhead, VMEM-safe on v7x,
    and small enough that the 'parallel' axis has >= 2 steps when rows allow."""
    align = max(8, 32 // max(itemsize, 1))                # f32: 8, bf16: 16, 8-bit: 32
    budget = 4 * 1024 * 1024                              # bytes per x-tile buffer
    tm = max(align, (budget // max(hw * itemsize, 1)) // align * align)
    if rows >= 2 * align:                                 # keep >= 2 grid steps (v7x 2 TCs)
        half = max(align, ((rows // 2) // align) * align)
        tm = min(tm, half)
    if tm >= rows:
        return rows                                       # single full-extent block (legal)
    return tm                                             # aligned; ragged last block is masked


@jax.jit
def adain(x, y):
    """AdaIN forward. x: (N, C, H, W); y: (N, 2*C) style vector [gamma | beta]."""
    N, C, H, W = x.shape
    HW = H * W
    rows = N * C
    itemsize = jnp.dtype(x.dtype).itemsize

    x2 = x.reshape(rows, HW)                              # native dtype, pure reshape
    gb = jnp.stack(
        [y[:, :C].reshape(rows), y[:, C:].reshape(rows)], axis=-1
    ).astype(jnp.float32)                                 # (rows, 2): [gamma, beta]

    tm = _pick_tile_rows(rows, HW, itemsize)
    grid = (pl.cdiv(rows, tm),)

    cost = pl.CostEstimate(
        flops=6 * rows * HW,
        transcendentals=2 * rows,                          # sqrt + reciprocal per row
        bytes_accessed=2 * rows * HW * itemsize + rows * 2 * 4,
    )

    out = pl.pallas_call(
        functools.partial(_adain_kernel, hw=HW),
        out_shape=jax.ShapeDtypeStruct((rows, HW), x.dtype),
        grid=grid,
        in_specs=[
            pl.BlockSpec((tm, HW), lambda i: (i, 0)),      # x tile (lane-dense last dim)
            pl.BlockSpec((tm, 2), lambda i: (i, 0)),       # packed [gamma, beta]
        ],
        out_specs=pl.BlockSpec((tm, HW), lambda i: (i, 0)),
        compiler_params=pltpu.CompilerParams(
            dimension_semantics=("parallel",),             # independent tiles; v7x 2-TC sharding
            vmem_limit_bytes=48 * 1024 * 1024,             # safe on v7x 64 MiB, ample on v5e/v6e
        ),
        cost_estimate=cost,
    )(x2, gb)

    return out.reshape(N, C, H, W)


# ------------------------------ reference ----------------------------------- #

def _adain_ref(x, y):
    N, C, H, W = x.shape
    xf = x.astype(jnp.float32)
    mu = jnp.mean(xf, axis=(2, 3), keepdims=True)
    sigma = jnp.sqrt(jnp.sum((xf - mu) ** 2, axis=(2, 3), keepdims=True) / (H * W - 1))
    g = y[:, :C].astype(jnp.float32).reshape(N, C, 1, 1)
    b = y[:, C:].astype(jnp.float32).reshape(N, C, 1, 1)
    return (g * (xf - mu) / (sigma + EPS) + b).astype(x.dtype)


if __name__ == "__main__":
    key = jax.random.PRNGKey(0)
    kx, ky = jax.random.split(key)

    # 1) f32, aligned rows.
    N, C, H, W = 2, 4, 16, 16
    x = jax.random.normal(kx, (N, C, H, W), jnp.float32)
    y = jax.random.normal(ky, (N, 2 * C), jnp.float32)
    out = adain(x, y)
    jax.block_until_ready(out)
    ref = _adain_ref(x, y)
    assert out.shape == (N, C, H, W) and out.dtype == x.dtype
    assert jnp.allclose(out, ref, rtol=1e-5, atol=1e-5), float(jnp.max(jnp.abs(out - ref)))

    # 2) f32, rows not a multiple of the tile -> exercises the ragged/masked path.
    N2, C2 = 3, 6
    x2 = jax.random.normal(kx, (N2, C2, H, W), jnp.float32)
    y2 = jax.random.normal(ky, (N2, 2 * C2), jnp.float32)
    out2 = adain(x2, y2)
    jax.block_until_ready(out2)
    ref2 = _adain_ref(x2, y2)
    assert jnp.allclose(out2, ref2, rtol=1e-5, atol=1e-5), float(jnp.max(jnp.abs(out2 - ref2)))

    # 3) bf16 inputs -> exercises native-dtype I/O with f32 in-kernel stats.
    x3 = x2.astype(jnp.bfloat16)
    y3 = y2.astype(jnp.bfloat16)
    out3 = adain(x3, y3)
    jax.block_until_ready(out3)
    ref3 = _adain_ref(x3, y3)
    assert out3.dtype == jnp.bfloat16
    diff = jnp.max(jnp.abs(out3.astype(jnp.float32) - ref3.astype(jnp.float32)))
    assert float(diff) < 5e-2, float(diff)

    print("KERNEL_OK")
</pallas_src>

<mosaic_0001>
module attributes {stable_mosaic.version = 11 : i64} {
  func.func @_adain_kernel(%arg0: i32, %arg1: memref<8x256xf32, #tpu.memory_space<vmem>>, %arg2: memref<8x2xf32, #tpu.memory_space<vmem>>, %arg3: memref<8x256xf32, #tpu.memory_space<vmem>>) attributes {dimension_semantics = [#tpu.dimension_semantics<parallel>], iteration_bounds = array<i64: 1>, scalar_prefetch = 0 : i64, scratch_operands = 0 : i64, tpu.core_type = #tpu.core_type<tc>, window_params = [{transform_indices = @transform_0, window_bounds = array<i64: 8, 256>}, {transform_indices = @transform_1, window_bounds = array<i64: 8, 2>}, {transform_indices = @transform_2, window_bounds = array<i64: 8, 256>}]} {
    %c0 = arith.constant 0 : index
    %c0_0 = arith.constant 0 : index
    %0 = vector.load %arg1[%c0, %c0_0] : memref<8x256xf32, #tpu.memory_space<vmem>>, vector<8x256xf32>
    %cst = arith.constant dense<0.000000e+00> : vector<8xf32>
    %1 = vector.multi_reduction <add>, %0, %cst [1] : vector<8x256xf32> to vector<8xf32>
    %2 = vector.shape_cast %1 : vector<8xf32> to vector<8x1xf32>
    %cst_1 = arith.constant 2.560000e+02 : f32
    %3 = vector.broadcast %cst_1 : f32 to vector<8x1xf32>
    %4 = arith.divf %2, %3 : vector<8x1xf32>
    %5 = vector.broadcast %4 : vector<8x1xf32> to vector<8x256xf32>
    %6 = arith.subf %0, %5 : vector<8x256xf32>
    %7 = arith.mulf %6, %6 : vector<8x256xf32>
    %cst_2 = arith.constant dense<0.000000e+00> : vector<8xf32>
    %8 = vector.multi_reduction <add>, %7, %cst_2 [1] : vector<8x256xf32> to vector<8xf32>
    %9 = vector.shape_cast %8 : vector<8xf32> to vector<8x1xf32>
    %cst_3 = arith.constant 0.00392156886 : f32
    %10 = vector.broadcast %cst_3 : f32 to vector<8x1xf32>
    %11 = arith.mulf %9, %10 : vector<8x1xf32>
    %12 = math.sqrt %11 : vector<8x1xf32>
    %c0_4 = arith.constant 0 : index
    %c0_5 = arith.constant 0 : index
    %13 = vector.load %arg2[%c0_4, %c0_5] : memref<8x2xf32, #tpu.memory_space<vmem>>, vector<8x1xf32>
    %c0_6 = arith.constant 0 : index
    %c1 = arith.constant 1 : index
    %14 = vector.load %arg2[%c0_6, %c1] : memref<8x2xf32, #tpu.memory_space<vmem>>, vector<8x1xf32>
    %cst_7 = arith.constant 9.99999993E-9 : f32
    %15 = vector.broadcast %cst_7 : f32 to vector<8x1xf32>
    %16 = arith.addf %12, %15 : vector<8x1xf32>
    %17 = arith.divf %13, %16 : vector<8x1xf32>
    %18 = vector.broadcast %17 : vector<8x1xf32> to vector<8x256xf32>
    %19 = arith.mulf %6, %18 : vector<8x256xf32>
    %20 = vector.broadcast %14 : vector<8x1xf32> to vector<8x256xf32>
    %21 = arith.addf %19, %20 : vector<8x256xf32>
    %c0_8 = arith.constant 0 : index
    %c0_9 = arith.constant 0 : index
    %22 = vector.load %arg3[%c0_8, %c0_9] : memref<8x256xf32, #tpu.memory_space<vmem>>, vector<8x256xf32>
    tpu.vector_store %arg3[%c0_8, %c0_9], %21 {strides = array<i32>} : memref<8x256xf32, #tpu.memory_space<vmem>>, vector<8x256xf32>,
    return
  }
  func.func @transform_0(%arg0: i32) -> (i32, i32) {
    %c0_i32 = arith.constant 0 : i32
    %c0_i32_0 = arith.constant 0 : i32
    return %arg0, %c0_i32 : i32, i32
  }
  func.func @transform_1(%arg0: i32) -> (i32, i32) {
    %c0_i32 = arith.constant 0 : i32
    %c0_i32_0 = arith.constant 0 : i32
    return %arg0, %c0_i32 : i32, i32
  }
  func.func @transform_2(%arg0: i32) -> (i32, i32) {
    %c0_i32 = arith.constant 0 : i32
    %c0_i32_0 = arith.constant 0 : i32
    return %arg0, %c0_i32 : i32, i32
  }
}

</mosaic_0001>

<llo_original>
// kernel: adain.1
$region0: #{adain.1}
  #allocation0 [shape = 'u32[]', space=smem, size = 0x4, offset = 0x4, fixed_abs, tag = 'smem constant byte address 0x4 - core index']
  #allocation1 [shape = 'u32[144,128]{1,0:T(1,128)}', space=vmem, size = 0x12000, scoped, tag = 'internal scratch']
  %s0 = inlined_call_operand.vmem [shape: f32[8,256], index: 0, kind: input, shape index: {}]
  %s1 = inlined_call_operand.vmem [shape: f32[8,2], index: 1, kind: input, shape index: {}]
  %s2 = inlined_call_operand.vmem [shape: f32[8,256], index: 2, kind: output, shape index: {}]
  %s3 = sld [smem:[#allocation0]]
  $region18: #{adain.1} parent=0
    _
  %s5 = ssub.s32 1, %s3
  %s6 = scalar_select 0, %s5, %s3
  // Predicated region
  $region2: #{adain.1} parent=0 // pred_check
    _
  $region3: #{adain.1} parent=0 // pred_check_branch
    %8 = sbr.rel (0) target = $region5
  $region4: #{adain.1} parent=0 // pred_region
    _
  $region5: #{adain.1} parent=0 // pred_fallthru
    _
  // Predicated region
  $region6: #{adain.1} parent=0 // pred_check
    _
  $region7: #{adain.1} parent=0 // pred_check_branch
    %10 = sbr.rel (0) target = $region9
  $region8: #{adain.1} parent=0 // pred_region
    _
  $region9: #{adain.1} parent=0 // pred_fallthru
    _
  %v11 = vld [vmem:[%s0] sm:$0xff]
  %v12 = vld [vmem:[%s0 + $0x8] sm:$0xff]
  %v13 = vadd.f32 %v11, %v12
  %14 = vadd.xlane.f32.xlu0 %v13
  %v15 = vpop.xlane.xlu0 %14
  %v16 = vrcp.pop 256.0
  %v17 = vmul.f32 %v15, %v16
  %v18 = vsub.f32 %v11, %v17
  %v19 = vsub.f32 %v12, %v17
  %v20 = vmul.f32 %v18, %v18
  %v21 = vmul.f32 %v19, %v19
  %v22 = vadd.f32 %v20, %v21
  %23 = vadd.xlane.f32.xlu0 %v22
  %v24 = vpop.xlane.xlu0 %23
  %v25 = vmul.f32 %v24, 0.003921569
  %v26 = vrsqrt.pop %v25
  %v27 = vmul.f32 %v25, %v26
  %vm28 = vcmp.eq.f32.partialorder %v25, inf
  %v29 = vsel %vm28, %v25, %v27
  %vm30 = vcmp.eq.f32.partialorder %v25, 0.0
  %v31 = vand.u32 %v25, 2147483648
  %v32 = vsel %vm30, %v31, %v29
  %v33 = vld [vmem:[%s1] sm:$0xff]
  %v34 = vadd.f32 %v32, 1e-08
  %v35 = vrcp.pop %v34
  %v36 = vmul.f32 %v33, %v35
  %38 = vset.pattern.permute.xlu0 0
  %39 = vperm.xlu0 %38, %v36
  %v40 = vpop.permute.xlu0 %39
  %v42 = vmul.f32 %v18, %v40
  %v43 = vmul.f32 %v19, %v40
  %45 = vset.pattern.permute.xlu0 1
  %46 = vperm.xlu0 %45, %v33
  %v47 = vpop.permute.xlu0 %46
  %v49 = vadd.f32 %v42, %v47
  %v50 = vadd.f32 %v43, %v47
  %51 = vst [vmem:[%s2] sm:$0xff] %v49
  %52 = vst [vmem:[%s2 + $0x8] sm:$0xff] %v50
  // Predicated region
  $region10: #{adain.1} parent=0 // pred_check
    _
  $region11: #{adain.1} parent=0 // pred_check_branch
    %54 = sbr.rel (0) target = $region13
  $region12: #{adain.1} parent=0 // pred_region
    _
  $region13: #{adain.1} parent=0 // pred_fallthru
    _
  // Predicated region
  $region14: #{adain.1} parent=0 // pred_check
    _
  $region15: #{adain.1} parent=0 // pred_check_branch
    %56 = sbr.rel (0) target = $region17
  $region16: #{adain.1} parent=0 // pred_region
    _
  $region17: #{adain.1} parent=0 // pred_fallthru
    _

</llo_original>
